<compile_context>
chip_gen: v7x
topology: tpu7x:2x2x1
jax: 0.10.0
libtpu: 0.0.40
codegen_flags: <defaults>
</compile_context>

<pallas_src>
import jax
import jax.numpy as jnp
from jax.experimental import pallas as pl
from jax.experimental.pallas import tpu as pltpu


# ---------------------------------------------------------------------------
# Per-step kernel: one forward() call == one launch, counter threaded through.
# ---------------------------------------------------------------------------
def _fakedv_step_kernel(step_ref, dv_ref, out_ref, step_out_ref):
    # step_ref:     SMEM (1,) int32 -- counter BEFORE this call.
    # dv_ref:       VMEM (T, B, D)  -- whole trajectory, resident.
    # out_ref:      VMEM (B, D).
    # step_out_ref: SMEM (1,) int32 -- counter AFTER this call.
    T = dv_ref.shape[0]
    i_new = step_ref[0] + 1                      # pre-increment, like PyTorch
    i_sel = jnp.minimum(i_new, T - 1)            # clamp instead of OOB access
    out_ref[...] = dv_ref[i_sel]                 # dynamic leading-axis select
    step_out_ref[0] = i_new


def make_fake_dv_step_call(T, B, D, dtype):
    del T  # static shape carried by the dv operand itself
    return pl.pallas_call(
        _fakedv_step_kernel,
        out_shape=(
            jax.ShapeDtypeStruct((B, D), dtype),
            jax.ShapeDtypeStruct((1,), jnp.int32),
        ),
        in_specs=[
            pl.BlockSpec(memory_space=pltpu.MemorySpace.SMEM),   # counter
            pl.BlockSpec(memory_space=pltpu.MemorySpace.VMEM),   # full gt_dv
        ],
        out_specs=(
            pl.BlockSpec(memory_space=pltpu.MemorySpace.VMEM),   # dv slice
            pl.BlockSpec(memory_space=pltpu.MemorySpace.SMEM),   # new counter
        ),
        # Reuse the counter's buffer for the updated counter output.
        input_output_aliases={0: 1},
    )


# ---------------------------------------------------------------------------
# Rollout kernel: the next `num_steps` forward() calls in ONE launch, no grid.
# ---------------------------------------------------------------------------
def _fakedv_rollout_kernel(step_ref, dv_ref, out_ref, step_out_ref):
    # step_ref:     SMEM (1,) int32 -- counter BEFORE the rollout.
    # dv_ref:       VMEM (T, B, D)  -- whole trajectory, resident.
    # out_ref:      VMEM (num_steps, B, D) -- one contiguous output slab.
    # step_out_ref: SMEM (1,) int32 -- counter AFTER the rollout.
    T = dv_ref.shape[0]
    N = out_ref.shape[0]
    start = step_ref[0]
    # Small static N: unrolled per-step clamped copy preserves the exact
    # per-step jnp.minimum(i, T-1) semantics even when the window crosses T-1
    # (a single clamped pl.ds window would not).  Each copy is a tiny
    # VMEM->vreg->VMEM move; no per-step DMA or grid overhead.
    for t in range(N):
        i_sel = jnp.minimum(start + 1 + t, T - 1)
        out_ref[t] = dv_ref[i_sel]
    step_out_ref[0] = start + N


def make_fake_dv_rollout_call(T, B, D, dtype, num_steps):
    del T
    return pl.pallas_call(
        _fakedv_rollout_kernel,
        out_shape=(
            jax.ShapeDtypeStruct((num_steps, B, D), dtype),
            jax.ShapeDtypeStruct((1,), jnp.int32),
        ),
        in_specs=[
            pl.BlockSpec(memory_space=pltpu.MemorySpace.SMEM),   # counter
            pl.BlockSpec(memory_space=pltpu.MemorySpace.VMEM),   # full gt_dv
        ],
        out_specs=(
            pl.BlockSpec(memory_space=pltpu.MemorySpace.VMEM),   # dv window
            pl.BlockSpec(memory_space=pltpu.MemorySpace.SMEM),   # new counter
        ),
        input_output_aliases={0: 1},
    )


class FakeDv:
    """Pallas port of RNN_AUV.FakeDv.

    forward(s, a, h0) -> (gt_dv[:, i], None) with i pre-incremented per call,
    matching the PyTorch module.  The counter lives on-device as a (1,) int32
    array threaded kernel-output -> next-call kernel-input; no host scalar is
    materialized per call.  rollout(N) batches the next N steps in one launch
    and advances the counter inside the kernel.
    """

    def __init__(self, dv, dt=0.1):
        del dt
        B, T, D = dv.shape
        self._B, self._T, self._D = B, T, D
        self._dtype = dv.dtype
        # Kernel layout: (T, B, D) -> time-step select is a leading-axis index.
        self.gt_dv_tbd = jnp.transpose(dv, (1, 0, 2))
        self._step_call = jax.jit(make_fake_dv_step_call(T, B, D, dv.dtype))
        self._rollout_calls = {}
        # Device-resident counter: value of i BEFORE the next forward().
        self._step = jnp.zeros((1,), dtype=jnp.int32)

    @property
    def i(self):
        # Host view of the counter (forces a device sync; debugging only).
        return int(self._step[0])

    def forward(self, s, a, h0):
        del s, a, h0  # ignored, exactly like the PyTorch module
        out, self._step = self._step_call(self._step, self.gt_dv_tbd)
        return out, None

    def rollout(self, num_steps):
        """Run the next `num_steps` forward() calls in one pallas_call.

        Returns (num_steps, B, D) where row t == gt_dv[:, i_prev + 1 + t].
        Advances the device-resident counter by num_steps (inside the kernel).
        """
        call = self._rollout_calls.get(num_steps)
        if call is None:
            call = jax.jit(
                make_fake_dv_rollout_call(
                    self._T, self._B, self._D, self._dtype, num_steps
                )
            )
            self._rollout_calls[num_steps] = call
        out, self._step = call(self._step, self.gt_dv_tbd)
        return out


if __name__ == "__main__":
    key = jax.random.PRNGKey(0)
    B, T, D = 2, 8, 32          # batch=2, trajectory length=8, dv dim=32
    SEQ, STATE, ACT, HID = 8, 13, 6, 32

    k_dv, k_s, k_a, k_h = jax.random.split(key, 4)
    gt_dv = jax.random.normal(k_dv, (B, T, D), dtype=jnp.float32)
    s = jax.random.normal(k_s, (B, SEQ, STATE), dtype=jnp.float32)   # ignored
    a = jax.random.normal(k_a, (B, SEQ, ACT), dtype=jnp.float32)     # ignored
    h0 = jax.random.normal(k_h, (1, B, HID), dtype=jnp.float32)      # ignored

    model = FakeDv(gt_dv)

    # First call: counter pre-incremented -> gt_dv[:, 1].
    out, hidden = model.forward(s, a, h0)
    out = jax.block_until_ready(out)
    assert hidden is None
    assert out.shape == (B, D), out.shape
    assert jnp.allclose(out, gt_dv[:, 1]), "mismatch vs reference (call 1)"

    # Second call -> gt_dv[:, 2]; counter stayed device-resident between calls.
    out2, _ = model.forward(s, a, h0)
    out2 = jax.block_until_ready(out2)
    assert jnp.allclose(out2, gt_dv[:, 2]), "mismatch vs reference (call 2)"

    # Batched path: next 4 steps in one launch -> gt_dv[:, 3:7].
    outs = jax.block_until_ready(model.rollout(4))
    ref = jnp.transpose(gt_dv[:, 3:7], (1, 0, 2))      # (4, B, D)
    assert outs.shape == (4, B, D), outs.shape
    assert jnp.allclose(outs, ref), "mismatch vs reference (rollout)"

    # Counter advanced inside the rollout kernel: next forward -> gt_dv[:, 7].
    out3, _ = model.forward(s, a, h0)
    out3 = jax.block_until_ready(out3)
    assert jnp.allclose(out3, gt_dv[:, 7]), "mismatch vs reference (call 7)"

    print("KERNEL_OK")
</pallas_src>

<mosaic_0001>
module attributes {stable_mosaic.version = 11 : i64} {
  func.func @_fakedv_step_kernel(%arg0: memref<1xi32, #tpu.memory_space<smem>>, %arg1: memref<8x2x32xf32, #tpu.memory_space<vmem>>, %arg2: memref<2x32xf32, #tpu.memory_space<vmem>>, %arg3: memref<1xi32, #tpu.memory_space<smem>>) attributes {dimension_semantics = [], scalar_prefetch = 0 : i64, scratch_operands = 0 : i64, tpu.core_type = #tpu.core_type<tc>} {
    %c0 = arith.constant 0 : index
    %0 = memref.load %arg0[%c0] : memref<1xi32, #tpu.memory_space<smem>>
    %c1_i32 = arith.constant 1 : i32
    %1 = arith.addi %0, %c1_i32 : i32
    %c7_i32 = arith.constant 7 : i32
    %2 = arith.minsi %1, %c7_i32 : i32
    %3 = arith.index_cast %2 : i32 to index
    %c0_0 = arith.constant 0 : index
    %c0_1 = arith.constant 0 : index
    %4 = vector.load %arg1[%3, %c0_0, %c0_1] : memref<8x2x32xf32, #tpu.memory_space<vmem>>, vector<1x2x32xf32>
    %5 = vector.shape_cast %4 : vector<1x2x32xf32> to vector<2x32xf32>
    %c0_2 = arith.constant 0 : index
    %c0_3 = arith.constant 0 : index
    %6 = vector.load %arg2[%c0_2, %c0_3] : memref<2x32xf32, #tpu.memory_space<vmem>>, vector<2x32xf32>
    tpu.vector_store %arg2[%c0_2, %c0_3], %5 {strides = array<i32>} : memref<2x32xf32, #tpu.memory_space<vmem>>, vector<2x32xf32>,
    %c0_4 = arith.constant 0 : index
    %7 = memref.load %arg3[%c0_4] : memref<1xi32, #tpu.memory_space<smem>>
    memref.store %1, %arg3[%c0_4] : memref<1xi32, #tpu.memory_space<smem>>
    return
  }
}

</mosaic_0001>

<llo_original>
// kernel: tpu_custom_call.1
$region0: #{tpu_custom_call.1}
  #allocation0 [shape = 'u32[]', space=smem, size = 0x4, offset = 0x4, fixed_abs, tag = 'smem constant byte address 0x4 - core index']
  #allocation1 [shape = 'u32[144,128]{1,0:T(1,128)}', space=vmem, size = 0x12000, scoped, tag = 'internal scratch']
  #allocation2 [shape = 's32[1]{0:T(128)S(6)}', space=smem, size = 0x200, scoped, tag = 'scoped memory for tpu_custom_call.1']
  %s0 = inlined_call_operand.<no memory space> [shape: s32[1], index: 0, kind: input, shape index: {}, may-alias: {0,3}]
  %s1 = inlined_call_operand.hbm [shape: f32[8,2,32], index: 1, kind: input, shape index: {}]
  %s2 = inlined_call_operand.hbm [shape: f32[2,32], index: 2, kind: output, shape index: {0}]
  %s3 = inlined_call_operand.hbm [shape: s32[1], index: 3, kind: output, shape index: {1}, may-alias: {0,3}]
  %4 = xla_tuple %s2, %s3
  %s5 = sld [smem:[#allocation0]]
  $region30: #{tpu_custom_call.1} parent=0
    _
  %s7 = ssub.s32 1, %s5
  %s8 = scalar_select 0, %s7, %s5
  %9 = sst [smem:[#allocation2]] %s0
  $region1: #{tpu_custom_call.1} parent=0
    #allocation3 [shape = 'u8[8192]{0}', space=vmem, size = 0x2000, scoped, tag = 'input window, operand 1, single buffered']
    #allocation4 [shape = 's32[1]{0}', space=sflag, size = 0x4, scoped, tag = 'scoped memory for tpu_custom_call.1']
    #allocation5 [shape = 's32[1]{0}', space=sflag, size = 0x4, scoped, tag = 'scoped memory for tpu_custom_call.1']
    #allocation6 [shape = 's32[1]{0}', space=sflag, size = 0x4, scoped, tag = 'scoped memory for tpu_custom_call.1']
    #allocation7 [shape = 'u8[1024]{0}', space=vmem, size = 0x400, scoped, tag = 'output window, operand 0, single buffered']
    #allocation8 [shape = 'u8[512]{0}', space=smem, size = 0x200, scoped, tag = 'output window, operand 1, single buffered']
    %10 = vsyncpa [#allocation4], 0
    %11 = vsyncpa [#allocation5], 0
    %12 = vsyncpa [#allocation6], 0
    // Predicated region
    $region2: #{tpu_custom_call.1} parent=1 // pred_check
      _
    $region3: #{tpu_custom_call.1} parent=1 // pred_check_branch
      %14 = sbr.rel (0) target = $region5
    $region4: #{tpu_custom_call.1} parent=1 // pred_region
      _
    $region5: #{tpu_custom_call.1} parent=1 // pred_fallthru
      _
    // Predicated region
    $region6: #{tpu_custom_call.1} parent=1 // pred_check
      _
    $region7: #{tpu_custom_call.1} parent=1 // pred_check_branch
      %16 = sbr.rel (0) target = $region9
    $region8: #{tpu_custom_call.1} parent=1 // pred_region
      %s18 = ssub.s32 256, 256
      %19 = vsyncadd [#allocation4], %s18
      %s20 = sshll.u32 [#allocation3], 4
      %s21 = int_to_ptr.vmem [resolvable:$true] %s20
      %26 = dma.hbm_to_vmem [thread:$0]  %s1, 256, %s21, [#allocation4], 32, 32, 2
    $region9: #{tpu_custom_call.1} parent=1 // pred_fallthru
      _
    // Predicated region
    $region10: #{tpu_custom_call.1} parent=1 // pred_check
      _
    $region11: #{tpu_custom_call.1} parent=1 // pred_check_branch
      %28 = sbr.rel (0) target = $region13
    $region12: #{tpu_custom_call.1} parent=1 // pred_region
      %29 = dma.done [#allocation4], 256
    $region13: #{tpu_custom_call.1} parent=1 // pred_fallthru
      _
    %s30 = sld [smem:[#allocation2]]
    %s31 = sadd.s32 %s30, 1
    %p32 = scmp.lt.s32.totalorder %s31, 7
    %s33 = scalar_select %p32, %s31, 7
    %s34 = smul.u32 %s33, 2
    %s35 = scalar_lea.vmem [#allocation3], %s34
    %v36 = vld [vmem:[%s35] sm:$0x3]
    %vm37 = vcmask 254976
    %38 = vst.msk [vmem:[#allocation7] sm:$0x3] %vm37, %v36
    %s39 = scalar_lea.smem [#allocation8], 0
    %40 = sst [smem:[%s39]] %s31
    // Predicated region
    $region14: #{tpu_custom_call.1} parent=1 // pred_check
      _
    $region15: #{tpu_custom_call.1} parent=1 // pred_check_branch
      %42 = sbr.rel (0) target = $region17
    $region16: #{tpu_custom_call.1} parent=1 // pred_region
      %s44 = ssub.s32 32, 32
      %45 = vsyncadd [#allocation5], %s44
      %s47 = sshll.u32 [#allocation7], 4
      %s48 = int_to_ptr.vmem [resolvable:$true] %s47
      %50 = dma.vmem_to_hbm [thread:$0]  %s48, 32, %s2, [#allocation5]
    $region17: #{tpu_custom_call.1} parent=1 // pred_fallthru
      _
    // Predicated region
    $region18: #{tpu_custom_call.1} parent=1 // pred_check
      _
    $region19: #{tpu_custom_call.1} parent=1 // pred_check_branch
      %52 = sbr.rel (0) target = $region21
    $region20: #{tpu_custom_call.1} parent=1 // pred_region
      %s54 = ssub.s32 16, 16
      %55 = vsyncadd [#allocation6], %s54
      %58 = dma.smem_to_hbm [#allocation8], 16, %s3, [#allocation6]
    $region21: #{tpu_custom_call.1} parent=1 // pred_fallthru
      _
    // Predicated region
    $region22: #{tpu_custom_call.1} parent=1 // pred_check
      _
    $region23: #{tpu_custom_call.1} parent=1 // pred_check_branch
      %60 = sbr.rel (0) target = $region25
    $region24: #{tpu_custom_call.1} parent=1 // pred_region
      %61 = dma.done [#allocation5], 32
    $region25: #{tpu_custom_call.1} parent=1 // pred_fallthru
      _
    // Predicated region
    $region26: #{tpu_custom_call.1} parent=1 // pred_check
      _
    $region27: #{tpu_custom_call.1} parent=1 // pred_check_branch
      %63 = sbr.rel (0) target = $region29
    $region28: #{tpu_custom_call.1} parent=1 // pred_region
      %64 = dma.done [#allocation6], 16
    $region29: #{tpu_custom_call.1} parent=1 // pred_fallthru
      _
    %65 = sfence
    %66 = vsyncpa [#allocation4], 1
    %67 = vsyncpa [#allocation5], 1
    %68 = vsyncpa [#allocation6], 1

</llo_original>
